<compile_context>
chip_gen: v6e
topology: v6e:2x2x1
jax: 0.10.0
libtpu: 0.0.40
codegen_flags: <defaults>
</compile_context>

<pallas_src>
import numpy as np
import jax
import jax.numpy as jnp
from jax.experimental import pallas as pl
from jax.experimental.pallas import tpu as pltpu

K_SPACE = [1, 64, 128, 256, 512, 1024, 2048]


# --------------------------- Pallas kernel ----------------------------------
# xemb_ref: (F, D, TB)  mixed embeddings, batch on the 128-lane axis
# lin_ref:  (1, TB)     per-sample linear term (already summed over fields)
# bias_ref: (1,)        scalar bias in SMEM
# out_ref:  (1, TB)     lane-dense output
def qfm_kernel(xemb_ref, lin_ref, bias_ref, out_ref):
    e = xemb_ref[...].astype(jnp.float32)                       # (F, D, TB)
    # FactorizationMachine(reduce_sum=True): 0.5 * sum_d[(sum_f e)^2 - sum_f e^2]
    s = jnp.sum(e, axis=0)                                      # (D, TB)
    sq = jnp.sum(e * e, axis=0)                                 # (D, TB)
    fm = 0.5 * jnp.sum(s * s - sq, axis=0, keepdims=True)       # (1, TB)
    out_ref[...] = lin_ref[...] + bias_ref[0] + fm


def qfm_forward(x_emb, lin_sum, bias, *, tb=512, storage_dtype=None):
    """x_emb: (B, F, D) mixed embeddings; lin_sum: (B,); bias: (1,).

    Returns (B,) float32, matching `linear(x) + fm(x_emb)` squeezed.
    """
    b, f, d = x_emb.shape
    if storage_dtype is not None:
        x_emb = x_emb.astype(storage_dtype)        # e.g. bf16 HBM storage

    # Batch tile on the lane axis: multiple of 128, shrunk for small batches.
    tb = max(128, (int(tb) // 128) * 128)
    b_ceil = ((b + 127) // 128) * 128
    tb = min(tb, b_ceil)
    b_pad = ((b_ceil + tb - 1) // tb) * tb
    if b_pad != b:                                  # pad ragged batch, slice later
        x_emb = jnp.pad(x_emb, ((0, b_pad - b), (0, 0), (0, 0)))
        lin_sum = jnp.pad(lin_sum, ((0, b_pad - b),))

    x_fdb = jnp.transpose(x_emb, (1, 2, 0))         # (F, D, B)  lane-dense
    lin_2d = lin_sum.reshape(1, b_pad).astype(jnp.float32)

    out = pl.pallas_call(
        qfm_kernel,
        out_shape=jax.ShapeDtypeStruct((1, b_pad), jnp.float32),
        grid=(b_pad // tb,),
        in_specs=[
            pl.BlockSpec((f, d, tb), lambda i: (0, 0, i)),
            pl.BlockSpec((1, tb), lambda i: (0, i)),
            pl.BlockSpec(memory_space=pltpu.MemorySpace.SMEM),
        ],
        out_specs=pl.BlockSpec((1, tb), lambda i: (0, i)),
        compiler_params=pltpu.CompilerParams(
            dimension_semantics=("parallel",)),
    )(x_fdb, lin_2d, bias.astype(jnp.float32))
    return out[0, :b]                                # matches torch `.squeeze(1)`


if __name__ == "__main__":
    # Small synthetic configuration consistent with the module's __init__.
    field_dims = np.array([8, 16, 200, 400], dtype=np.int64)
    dim, M, threshold = 16, 4, 100
    B = 16
    F, NK = len(field_dims), len(K_SPACE)
    total = int(field_dims.sum())
    offsets = np.concatenate([[0], np.cumsum(field_dims)[:-1]]).astype(np.int32)
    field_of = np.concatenate(
        [np.full(fd, i, np.int32) for i, fd in enumerate(field_dims)])

    key = jax.random.PRNGKey(0)
    k_emb, k_lin, k_arch, k_x, k_cb = jax.random.split(key, 5)

    # deterministic parameter init (synthetic, no checkpoint load)
    emb = jax.random.normal(k_emb, (total, dim), jnp.float32) * 0.01
    lin_w = jax.random.normal(k_lin, (total,), jnp.float32) * 0.01
    bias = jnp.zeros((1,), jnp.float32)

    # arch parameters & prior flags (mirrors QFMgs.__init__)
    arch = np.full((F, NK), 0.5, np.float32)
    arch += np.asarray(jax.random.normal(k_arch, (F, NK))) * 0.001
    prior = np.full((F, NK), -1e5, np.float32)
    for i in range(F):
        if field_dims[i] < threshold:
            prior[i, 0] = 1.0
        for kk in range(1, NK):
            if K_SPACE[kk] * 2.5 > field_dims[i]:
                break
            prior[i, kk] = 1.0
            arch[i, kk] -= 0.002 * kk
    # TODO(synk): WeightedSumQuatEmbedding's internal gumbel-softmax over the
    # arch parameters is not in the provided source; use a deterministic masked
    # softmax of (arch + prior_flag) as the mixture weights instead.
    weights = jax.nn.softmax(jnp.asarray(arch) + jnp.asarray(prior), axis=1)
    weights_nk_f = weights.T                                      # (NK, F)

    # Per-option reconstruction tables: option 0 = full-precision embedding,
    # option k>=1 = product-quantized reconstruction from synthetic codebooks
    # with deterministic codebook indices (real module learns these via kmeans).
    plen = dim // M
    tables = [emb]
    cb_keys = jax.random.split(k_cb, NK)
    feat_ids = np.arange(total)
    for kk in range(1, NK):
        Kk = K_SPACE[kk]
        codebook = jax.random.normal(cb_keys[kk], (F, Kk, dim), jnp.float32) * 0.01
        parts = []
        for m in range(M):
            idx = (feat_ids * (m + 3)) % Kk
            parts.append(codebook[field_of, idx, m * plen:(m + 1) * plen])
        tables.append(jnp.concatenate(parts, axis=1))
    tables = jnp.stack(tables, axis=0)                            # (NK, total, dim)

    # Fold the arch mixture into the tables once (the weights depend only on
    # the field, so this commutes with the row gather) -> (total, dim).
    mixed_table = jnp.einsum('kt,ktd->td', weights_nk_f[:, field_of], tables)

    # batch of field ids: Long tensor of size (batch, num_fields)
    x = jnp.stack(
        [jax.random.randint(jax.random.fold_in(k_x, f), (B,), 0, int(field_dims[f]))
         for f in range(F)], axis=1)                              # (B, F) int32
    gid = x + jnp.asarray(offsets)[None, :]                       # global ids
    x_emb = mixed_table[gid]                                      # (B, F, D)
    lin_sum = lin_w[gid].sum(axis=1)                              # (B,)

    out = jax.block_until_ready(qfm_forward(x_emb, lin_sum, bias, tb=512))

    # plain-JAX reference following the original (NK,B,F,D) recon path
    recon = tables[:, gid, :]                                     # (NK, B, F, D)
    x_emb_ref = jnp.einsum('kf,kbfd->bfd', weights_nk_f, recon)
    s = x_emb_ref.sum(1)
    sq = (x_emb_ref ** 2).sum(1)
    ref = lin_w[gid].sum(1) + bias[0] + 0.5 * (s * s - sq).sum(1)
    assert out.shape == (B,)
    assert jnp.allclose(out, ref, atol=1e-5, rtol=1e-5)
    print("KERNEL_OK")
</pallas_src>

<mosaic_0001>
module attributes {stable_mosaic.version = 11 : i64} {
  func.func @qfm_kernel(%arg0: i32, %arg1: memref<4x16x128xf32, #tpu.memory_space<vmem>>, %arg2: memref<1x128xf32, #tpu.memory_space<vmem>>, %arg3: memref<1xf32, #tpu.memory_space<smem>>, %arg4: memref<1x128xf32, #tpu.memory_space<vmem>>) attributes {dimension_semantics = [#tpu.dimension_semantics<parallel>], iteration_bounds = array<i64: 1>, scalar_prefetch = 0 : i64, scratch_operands = 0 : i64, tpu.core_type = #tpu.core_type<tc>, window_params = [{transform_indices = @transform_0, window_bounds = array<i64: 4, 16, 128>}, {transform_indices = @transform_1, window_bounds = array<i64: 1, 128>}, {transform_indices = @transform_2, window_bounds = array<i64: 1>}, {transform_indices = @transform_3, window_bounds = array<i64: 1, 128>}]} {
    %c0 = arith.constant 0 : index
    %c0_0 = arith.constant 0 : index
    %c0_1 = arith.constant 0 : index
    %0 = vector.load %arg1[%c0, %c0_0, %c0_1] : memref<4x16x128xf32, #tpu.memory_space<vmem>>, vector<4x16x128xf32>
    %cst = arith.constant dense<0.000000e+00> : vector<16x128xf32>
    %1 = vector.multi_reduction <add>, %0, %cst [0] : vector<4x16x128xf32> to vector<16x128xf32>
    %2 = arith.mulf %0, %0 : vector<4x16x128xf32>
    %cst_2 = arith.constant dense<0.000000e+00> : vector<16x128xf32>
    %3 = vector.multi_reduction <add>, %2, %cst_2 [0] : vector<4x16x128xf32> to vector<16x128xf32>
    %4 = arith.mulf %1, %1 : vector<16x128xf32>
    %5 = arith.subf %4, %3 : vector<16x128xf32>
    %cst_3 = arith.constant dense<0.000000e+00> : vector<128xf32>
    %6 = vector.multi_reduction <add>, %5, %cst_3 [0] : vector<16x128xf32> to vector<128xf32>
    %7 = vector.shape_cast %6 : vector<128xf32> to vector<1x128xf32>
    %cst_4 = arith.constant 5.000000e-01 : f32
    %8 = vector.broadcast %cst_4 : f32 to vector<1x128xf32>
    %9 = arith.mulf %8, %7 : vector<1x128xf32>
    %c0_5 = arith.constant 0 : index
    %c0_6 = arith.constant 0 : index
    %10 = vector.load %arg2[%c0_5, %c0_6] : memref<1x128xf32, #tpu.memory_space<vmem>>, vector<1x128xf32>
    %c0_7 = arith.constant 0 : index
    %11 = memref.load %arg3[%c0_7] : memref<1xf32, #tpu.memory_space<smem>>
    %12 = vector.broadcast %11 : f32 to vector<1x128xf32>
    %13 = arith.addf %10, %12 : vector<1x128xf32>
    %14 = arith.addf %13, %9 : vector<1x128xf32>
    %c0_8 = arith.constant 0 : index
    %c0_9 = arith.constant 0 : index
    %15 = vector.load %arg4[%c0_8, %c0_9] : memref<1x128xf32, #tpu.memory_space<vmem>>, vector<1x128xf32>
    tpu.vector_store %arg4[%c0_8, %c0_9], %14 {strides = array<i32>} : memref<1x128xf32, #tpu.memory_space<vmem>>, vector<1x128xf32>,
    return
  }
  func.func @transform_0(%arg0: i32) -> (i32, i32, i32) {
    %c0_i32 = arith.constant 0 : i32
    %c0_i32_0 = arith.constant 0 : i32
    %c0_i32_1 = arith.constant 0 : i32
    return %c0_i32, %c0_i32_0, %arg0 : i32, i32, i32
  }
  func.func @transform_1(%arg0: i32) -> (i32, i32) {
    %c0_i32 = arith.constant 0 : i32
    %c0_i32_0 = arith.constant 0 : i32
    return %c0_i32, %arg0 : i32, i32
  }
  func.func @transform_2(%arg0: i32) -> i32 {
    %c0_i32 = arith.constant 0 : i32
    %c0_i32_0 = arith.constant 0 : i32
    return %c0_i32 : i32
  }
  func.func @transform_3(%arg0: i32) -> (i32, i32) {
    %c0_i32 = arith.constant 0 : i32
    %c0_i32_0 = arith.constant 0 : i32
    return %c0_i32, %arg0 : i32, i32
  }
}

</mosaic_0001>

<llo_original>
// kernel: tpu_custom_call.1
$region0: #{tpu_custom_call.1}
  #allocation0 [shape = 'u32[]', space=smem, size = 0x4, offset = 0x4, fixed_abs, tag = 'smem constant byte address 0x4 - core index']
  #allocation1 [shape = 'u32[144,128]{1,0:T(1,128)}', space=vmem, size = 0x12000, scoped, tag = 'internal scratch']
  #allocation2 [shape = 'f32[1]{0:T(128)S(6)}', space=smem, size = 0x200, scoped, tag = 'scoped memory for tpu_custom_call.1']
  %s0 = inlined_call_operand.hbm [shape: f32[4,16,128], index: 0, kind: input, shape index: {}]
  %s1 = inlined_call_operand.vmem [shape: f32[1,128], index: 1, kind: input, shape index: {}]
  %s2 = inlined_call_operand.<no memory space> [shape: f32[1], index: 2, kind: input, shape index: {}]
  %s3 = inlined_call_operand.hbm [shape: f32[1,128], index: 3, kind: output, shape index: {}]
  %s4 = sld [smem:[#allocation0]]
  $region26: #{tpu_custom_call.1} parent=0
    _
  %s6 = ssub.s32 1, %s4
  %s7 = scalar_select 0, %s6, %s4
  %8 = sst [smem:[#allocation2]] %s2
  $region1: #{tpu_custom_call.1} parent=0
    #allocation3 [shape = 'u8[32768]{0}', space=vmem, size = 0x8000, scoped, tag = 'input window, operand 0, single buffered']
    #allocation4 [shape = 's32[1]{0}', space=sflag, size = 0x4, scoped, tag = 'scoped memory for tpu_custom_call.1']
    #allocation5 [shape = 's32[1]{0}', space=sflag, size = 0x4, scoped, tag = 'scoped memory for tpu_custom_call.1']
    #allocation6 [shape = 'u8[512]{0}', space=vmem, size = 0x400, scoped, tag = 'output window, operand 0, single buffered']
    %9 = vsyncpa [#allocation4], 0
    %10 = vsyncpa [#allocation5], 0
    // Predicated region
    $region2: #{tpu_custom_call.1} parent=1 // pred_check
      _
    $region3: #{tpu_custom_call.1} parent=1 // pred_check_branch
      %12 = sbr.rel (0) target = $region5
    $region4: #{tpu_custom_call.1} parent=1 // pred_region
      %s14 = ssub.s32 1024, 1024
      %15 = vsyncadd [#allocation4], %s14
      %s16 = sshll.u32 [#allocation3], 4
      %s17 = int_to_ptr.vmem [resolvable:$true] %s16
      %22 = dma.hbm_to_vmem [thread:$0]  %s0, 1024, %s17, [#allocation4], 128, 128, 8
    $region5: #{tpu_custom_call.1} parent=1 // pred_fallthru
      _
    // Predicated region
    $region6: #{tpu_custom_call.1} parent=1 // pred_check
      _
    $region7: #{tpu_custom_call.1} parent=1 // pred_check_branch
      %24 = sbr.rel (0) target = $region9
    $region8: #{tpu_custom_call.1} parent=1 // pred_region
      _
    $region9: #{tpu_custom_call.1} parent=1 // pred_fallthru
      _
    // Predicated region
    $region10: #{tpu_custom_call.1} parent=1 // pred_check
      _
    $region11: #{tpu_custom_call.1} parent=1 // pred_check_branch
      %26 = sbr.rel (0) target = $region13
    $region12: #{tpu_custom_call.1} parent=1 // pred_region
      _
    $region13: #{tpu_custom_call.1} parent=1 // pred_fallthru
      _
    // Predicated region
    $region14: #{tpu_custom_call.1} parent=1 // pred_check
      _
    $region15: #{tpu_custom_call.1} parent=1 // pred_check_branch
      %28 = sbr.rel (0) target = $region17
    $region16: #{tpu_custom_call.1} parent=1 // pred_region
      %29 = dma.done [#allocation4], 1024
    $region17: #{tpu_custom_call.1} parent=1 // pred_fallthru
      _
    %v30 = vld [vmem:[#allocation3] sm:$0xff]
    %v31 = vld [vmem:[#allocation3 + $0x8] sm:$0xff]
    %v32 = vld [vmem:[#allocation3 + $0x10] sm:$0xff]
    %v33 = vld [vmem:[#allocation3 + $0x18] sm:$0xff]
    %v34 = vld [vmem:[#allocation3 + $0x20] sm:$0xff]
    %v35 = vld [vmem:[#allocation3 + $0x28] sm:$0xff]
    %v36 = vld [vmem:[#allocation3 + $0x30] sm:$0xff]
    %v37 = vld [vmem:[#allocation3 + $0x38] sm:$0xff]
    %v38 = vadd.f32 %v30, %v32
    %v39 = vadd.f32 %v38, %v34
    %v40 = vadd.f32 %v39, %v36
    %v41 = vadd.f32 %v31, %v33
    %v42 = vadd.f32 %v41, %v35
    %v43 = vadd.f32 %v42, %v37
    %v44 = vmul.f32 %v30, %v30
    %v45 = vmul.f32 %v31, %v31
    %v46 = vmul.f32 %v32, %v32
    %v47 = vmul.f32 %v33, %v33
    %v48 = vmul.f32 %v34, %v34
    %v49 = vmul.f32 %v35, %v35
    %v50 = vmul.f32 %v36, %v36
    %v51 = vmul.f32 %v37, %v37
    %v52 = vadd.f32 %v44, %v46
    %v53 = vadd.f32 %v52, %v48
    %v54 = vadd.f32 %v53, %v50
    %v55 = vadd.f32 %v45, %v47
    %v56 = vadd.f32 %v55, %v49
    %v57 = vadd.f32 %v56, %v51
    %v58 = vmul.f32 %v40, %v40
    %v59 = vmul.f32 %v43, %v43
    %v60 = vsub.f32 %v58, %v54
    %v61 = vsub.f32 %v59, %v57
    %v62 = vadd.f32 %v60, %v61
    %v63 = vrot.slane %v62, 4
    %v64 = vadd.f32 %v62, %v63
    %v65 = vrot.slane %v64, 2
    %v66 = vadd.f32 %v64, %v65
    %v67 = vrot.slane %v66, 1
    %v68 = vadd.f32 %v66, %v67
    %v69 = vmul.f32 %v68, 0.5
    %v70 = vld [vmem:[%s1] sm:$0x1]
    %s71 = sld [smem:[#allocation2]]
    %v72 = vstv %s71
    %v73 = vadd.f32 %v70, %v72
    %v74 = vadd.f32 %v73, %v69
    %75 = vst [vmem:[#allocation6] sm:$0x1] %v74
    // Predicated region
    $region18: #{tpu_custom_call.1} parent=1 // pred_check
      _
    $region19: #{tpu_custom_call.1} parent=1 // pred_check_branch
      %77 = sbr.rel (0) target = $region21
    $region20: #{tpu_custom_call.1} parent=1 // pred_region
      %s79 = ssub.s32 16, 16
      %80 = vsyncadd [#allocation5], %s79
      %s82 = sshll.u32 [#allocation6], 4
      %s83 = int_to_ptr.vmem [resolvable:$true] %s82
      %85 = dma.vmem_to_hbm [thread:$0]  %s83, 16, %s3, [#allocation5]
    $region21: #{tpu_custom_call.1} parent=1 // pred_fallthru
      _
    // Predicated region
    $region22: #{tpu_custom_call.1} parent=1 // pred_check
      _
    $region23: #{tpu_custom_call.1} parent=1 // pred_check_branch
      %87 = sbr.rel (0) target = $region25
    $region24: #{tpu_custom_call.1} parent=1 // pred_region
      %88 = dma.done [#allocation5], 16
    $region25: #{tpu_custom_call.1} parent=1 // pred_fallthru
      _
    %89 = vsyncpa [#allocation4], 1
    %90 = vsyncpa [#allocation5], 1

</llo_original>
